<compile_context>
chip_gen: v7x
topology: tpu7x:2x2x1
jax: 0.10.0
libtpu: 0.0.40
codegen_flags: <defaults>
</compile_context>

<pallas_src>
import functools
import math

import jax
import jax.numpy as jnp
import numpy as np
from jax.experimental import pallas as pl
from jax.experimental.pallas import tpu as pltpu


# ---------------------------------------------------------------------------
# Fused kernel: per-batch  projection -> attention logits -> masked edge
# softmax -> message passing.  Everything stays resident in VMEM/vregs.
# ---------------------------------------------------------------------------
def _gat_fused_kernel(x_ref, w1_ref, w2_ref, asel_ref, adj_ref,
                      out_ref, a_ref, *, num_heads, out_feats, taxi_size,
                      negative_slope):
    H, F = num_heads, out_feats
    x = x_ref[0]                                           # (N, Fin)

    # ---- fused fc1 / fc2 projection (rows < taxi_size use fc1, rest fc2) ----
    # taxi_size is a static int; compute both tiny matmuls and row-select,
    # which keeps full (8, H*F) tiles (no sublane-unaligned slicing).
    y1 = jnp.dot(x, w1_ref[...], preferred_element_type=jnp.float32)   # (N, H*F)
    y2 = jnp.dot(x, w2_ref[...], preferred_element_type=jnp.float32)   # (N, H*F)
    row = jax.lax.broadcasted_iota(jnp.int32, y1.shape, 0)
    y = jnp.where(row < taxi_size, y1, y2)                             # (N, H*F)

    # ---- attention logits for ALL heads with one MXU matmul ------------------
    # asel is block-diagonal: asel[h*F + f, h] = attn_l[h, f]
    # NOTE: the reference module uses attn_l for BOTH el and er, so er == el.
    el = jnp.dot(y, asel_ref[...], preferred_element_type=jnp.float32)  # (N, H)
    elT = el.T                                                          # (H, N)

    adj = adj_ref[...]                                     # (N_dst, N_src)
    # TODO(synk): at scale pass adj as int8/bool to cut its DMA bytes 4x.
    adjb = adj > 0
    maskf = adjb.astype(jnp.float32)
    neg = jnp.float32(-1e30)

    out_parts = []
    # Static (unrolled) loop over heads: H is tiny, per-head work is a couple
    # of vregs; all heads share the resident y / adj tiles.
    for h in range(H):
        e = el[:, h:h + 1] + elT[h:h + 1, :]               # e[dst, src]  (N, N)
        e = jnp.where(e > 0, e, negative_slope * e)        # LeakyReLU
        e = jnp.where(adjb, e, neg)                        # mask missing edges
        m = jnp.max(e, axis=-1, keepdims=True)
        p = jnp.exp(e - m) * maskf                         # single select + mult
        s = jnp.sum(p, axis=-1, keepdims=True)
        a = p / jnp.maximum(s, jnp.float32(1e-20))         # rows w/o edges -> 0
        # TODO(synk): attn_drop (nn.Dropout(0.1)) is identity in eval mode;
        #             training-time stochastic dropout is not implemented.
        a_ref[0, h] = a                                    # (N, N) contiguous store

        y_h = y[:, h * F:(h + 1) * F]                      # (N_src, F)
        out_parts.append(
            jnp.dot(a, y_h, preferred_element_type=jnp.float32))  # (N_dst, F)

    # single lane-dense (N, H*F) store
    out_ref[0] = jnp.concatenate(out_parts, axis=-1)


def gat_forward(feat_b, w1_t, w2_t, asel, adj, *, num_heads, out_feats,
                taxi_size, negative_slope):
    b, N, Fin = feat_b.shape
    H, F = num_heads, out_feats
    HF = H * F
    kernel = functools.partial(
        _gat_fused_kernel, num_heads=H, out_feats=F, taxi_size=taxi_size,
        negative_slope=negative_slope)
    out_k, a_k = pl.pallas_call(
        kernel,
        out_shape=(
            jax.ShapeDtypeStruct((b, N, HF), jnp.float32),
            jax.ShapeDtypeStruct((b, H, N, N), jnp.float32),
        ),
        grid=(b,),
        in_specs=[
            pl.BlockSpec((1, N, Fin), lambda bi: (bi, 0, 0)),   # feat, per batch
            pl.BlockSpec((Fin, HF), lambda bi: (0, 0)),         # w1^T (resident)
            pl.BlockSpec((Fin, HF), lambda bi: (0, 0)),         # w2^T (resident)
            pl.BlockSpec((HF, H), lambda bi: (0, 0)),           # attn selector
            pl.BlockSpec((N, N), lambda bi: (0, 0)),            # adjacency mask
        ],
        out_specs=[
            pl.BlockSpec((1, N, HF), lambda bi: (bi, 0, 0)),
            pl.BlockSpec((1, H, N, N), lambda bi: (bi, 0, 0, 0)),
        ],
        compiler_params=pltpu.CompilerParams(
            dimension_semantics=("parallel",)),                 # b -> 2 TCs on v7x
    )(feat_b, w1_t, w2_t, asel, adj)
    return out_k, a_k


# ---------------------------------------------------------------------------
# Module wrapper with deterministic parameter init (xavier_normal, gain=sqrt(2))
# ---------------------------------------------------------------------------
class GATConvPallas:
    def __init__(self, in_feats, out_feats, num_heads, key,
                 attn_drop=0.1, negative_slope=0.2):
        self.in_feats = in_feats
        self.out_feats = out_feats
        self.num_heads = num_heads
        self.negative_slope = negative_slope
        gain = math.sqrt(2.0)  # nn.init.calculate_gain('relu')

        def xavier_normal(k, shape, fan_in, fan_out):
            std = gain * math.sqrt(2.0 / (fan_in + fan_out))
            return std * jax.random.normal(k, shape, dtype=jnp.float32)

        k1, k2, k3, k4 = jax.random.split(key, 4)
        oh = out_feats * num_heads
        # nn.Linear weights: (out_features, in_features)
        self.w1 = xavier_normal(k1, (oh, in_feats), in_feats, oh)
        self.w2 = xavier_normal(k2, (oh, in_feats), in_feats, oh)
        # attn params: (1, H, F)   (attn_r is created but unused, as in the module)
        self.attn_l = xavier_normal(k3, (1, num_heads, out_feats),
                                    num_heads * out_feats, out_feats)
        self.attn_r = xavier_normal(k4, (1, num_heads, out_feats),
                                    num_heads * out_feats, out_feats)

        # Precompute kernel-ready static operands once (no per-call XLA ops):
        #   transposed projection weights and the block-diagonal attention
        #   selector asel[h*F + f, h] = attn_l[h, f]  so  el = y @ asel.
        self.w1_t = jnp.asarray(self.w1.T)                       # (Fin, H*F)
        self.w2_t = jnp.asarray(self.w2.T)                       # (Fin, H*F)
        attn_hf = self.attn_l.reshape(num_heads, out_feats)      # (H, F)
        eye = jnp.eye(num_heads, dtype=jnp.float32)
        self.asel = (attn_hf[:, :, None] * eye[:, None, :]).reshape(
            num_heads * out_feats, num_heads)                    # (H*F, H)
        # TODO(synk): on v6e/v7x, bf16 MXU operands (f32 accum) would double
        #             matmul throughput; kept f32 to match the f32 module.

    def __call__(self, adj, feat, taxi_size):
        # NOTE: rows without any incoming edge get an all-zero attention row
        # (safe here because the harness forces self-loops).
        N, b, Fin = feat.shape
        H, F = self.num_heads, self.out_feats

        feat_b = jnp.transpose(feat, (1, 0, 2))                  # (b, N, Fin), tiny
        out_k, a_k = gat_forward(
            feat_b, self.w1_t, self.w2_t, self.asel, adj,
            num_heads=H, out_feats=F, taxi_size=taxi_size,
            negative_slope=self.negative_slope)

        # Final API layouts; the dense-edge (Nd,Ns,b,H,1) shape is 1-lane wide,
        # so this small transpose stays in XLA rather than in the kernel stores.
        rst = jnp.transpose(out_k, (1, 0, 2))                    # (N, b, H*F)
        a = jnp.transpose(a_k, (2, 3, 0, 1))[..., None]          # (Nd, Ns, b, H, 1)
        return rst, a


# ---------------------------------------------------------------------------
# Pure-JAX reference for verification
# ---------------------------------------------------------------------------
def reference(adj, feat, w1, w2, attn_l, taxi_size, num_heads, out_feats,
              negative_slope):
    N, b, Fin = feat.shape
    H, F = num_heads, out_feats
    y1 = jnp.einsum("nbi,oi->nbo", feat[:taxi_size], w1, precision="highest")
    y2 = jnp.einsum("nbi,oi->nbo", feat[taxi_size:], w2, precision="highest")
    y = jnp.concatenate([y1, y2], axis=0).reshape(N, b, H, F)
    el = jnp.sum(y * attn_l.reshape(1, 1, H, F), axis=-1)   # (N, b, H)
    er = el                                                 # module uses attn_l twice
    e = el[None, :, :, :] + er[:, None, :, :]               # (Nd, Ns, b, H)
    e = jnp.where(e > 0, e, negative_slope * e)
    mask = adj[:, :, None, None]
    e_m = jnp.where(mask > 0, e, -1e30)
    m = jnp.max(e_m, axis=1, keepdims=True)
    p = jnp.where(mask > 0, jnp.exp(e_m - m), 0.0)
    s = jnp.sum(p, axis=1, keepdims=True)
    a = p / jnp.maximum(s, 1e-20)
    out = jnp.einsum("dsbh,sbhf->dbhf", a, y, precision="highest")
    return out.reshape(N, b, H * F), a[..., None]


if __name__ == "__main__":
    key = jax.random.PRNGKey(0)
    N, b, in_feats, out_feats, num_heads = 8, 2, 16, 8, 4
    taxi_size = 4  # stands in for get_Parameter('taxi_size')

    kf, ka, kp = jax.random.split(key, 3)
    feat = jax.random.normal(kf, (N, b, in_feats), dtype=jnp.float32)
    adj = (jax.random.uniform(ka, (N, N)) < 0.5).astype(jnp.float32)
    adj = jnp.maximum(adj, jnp.eye(N, dtype=jnp.float32))  # self-loops (see note)

    model = GATConvPallas(in_feats, out_feats, num_heads, kp)
    rst, a = model(adj, feat, taxi_size)
    rst = jax.block_until_ready(rst)
    a = jax.block_until_ready(a)

    rst_ref, a_ref = reference(
        adj, feat, model.w1, model.w2, model.attn_l, taxi_size,
        num_heads, out_feats, model.negative_slope,
    )

    assert rst.shape == (N, b, num_heads * out_feats)
    assert a.shape == (N, N, b, num_heads, 1)
    np.testing.assert_allclose(np.asarray(rst), np.asarray(rst_ref),
                               rtol=2e-3, atol=2e-3)
    np.testing.assert_allclose(np.asarray(a), np.asarray(a_ref),
                               rtol=2e-3, atol=2e-3)
    print("KERNEL_OK")
</pallas_src>

<mosaic_0001>
module attributes {stable_mosaic.version = 11 : i64} {
  func.func @_gat_fused_kernel(%arg0: i32, %arg1: memref<1x8x16xf32, #tpu.memory_space<vmem>>, %arg2: memref<16x32xf32, #tpu.memory_space<vmem>>, %arg3: memref<16x32xf32, #tpu.memory_space<vmem>>, %arg4: memref<32x4xf32, #tpu.memory_space<vmem>>, %arg5: memref<8x8xf32, #tpu.memory_space<vmem>>, %arg6: memref<1x8x32xf32, #tpu.memory_space<vmem>>, %arg7: memref<1x4x8x8xf32, #tpu.memory_space<vmem>>) attributes {dimension_semantics = [#tpu.dimension_semantics<parallel>], iteration_bounds = array<i64: 2>, scalar_prefetch = 0 : i64, scratch_operands = 0 : i64, tpu.core_type = #tpu.core_type<tc>, window_params = [{transform_indices = @transform_0, window_bounds = array<i64: 1, 8, 16>}, {pipeline_mode = #tpu.pipeline_mode<synchronous>, transform_indices = @transform_1, window_bounds = array<i64: 16, 32>}, {pipeline_mode = #tpu.pipeline_mode<synchronous>, transform_indices = @transform_2, window_bounds = array<i64: 16, 32>}, {pipeline_mode = #tpu.pipeline_mode<synchronous>, transform_indices = @transform_3, window_bounds = array<i64: 32, 4>}, {pipeline_mode = #tpu.pipeline_mode<synchronous>, transform_indices = @transform_4, window_bounds = array<i64: 8, 8>}, {transform_indices = @transform_5, window_bounds = array<i64: 1, 8, 32>}, {transform_indices = @transform_6, window_bounds = array<i64: 1, 4, 8, 8>}]} {
    %c0 = arith.constant 0 : index
    %c0_0 = arith.constant 0 : index
    %c0_1 = arith.constant 0 : index
    %0 = vector.load %arg1[%c0, %c0_0, %c0_1] : memref<1x8x16xf32, #tpu.memory_space<vmem>>, vector<1x8x16xf32>
    %1 = vector.shape_cast %0 : vector<1x8x16xf32> to vector<8x16xf32>
    %c0_2 = arith.constant 0 : index
    %c0_3 = arith.constant 0 : index
    %2 = vector.load %arg2[%c0_2, %c0_3] : memref<16x32xf32, #tpu.memory_space<vmem>>, vector<16x32xf32>
    %cst = arith.constant dense<0.000000e+00> : vector<8x32xf32>
    %3 = tpu.matmul %1, %2, %cst {dimension_numbers = #tpu.dot_dimension_numbers<[1], [0], [0], [1], [0, 0, 1, 1], [], []>} : vector<8x16xf32>, vector<16x32xf32>, vector<8x32xf32> -> vector<8x32xf32>
    %c0_4 = arith.constant 0 : index
    %c0_5 = arith.constant 0 : index
    %4 = vector.load %arg3[%c0_4, %c0_5] : memref<16x32xf32, #tpu.memory_space<vmem>>, vector<16x32xf32>
    %cst_6 = arith.constant dense<0.000000e+00> : vector<8x32xf32>
    %5 = tpu.matmul %1, %4, %cst_6 {dimension_numbers = #tpu.dot_dimension_numbers<[1], [0], [0], [1], [0, 0, 1, 1], [], []>} : vector<8x16xf32>, vector<16x32xf32>, vector<8x32xf32> -> vector<8x32xf32>
    %6 = tpu.iota {dimensions = array<i32: 0>} : vector<8x32xi32>
    %c4_i32 = arith.constant 4 : i32
    %7 = vector.broadcast %c4_i32 : i32 to vector<8x32xi32>
    %8 = arith.cmpi slt, %6, %7 : vector<8x32xi32>
    %9 = arith.select %8, %3, %5 : vector<8x32xi1>, vector<8x32xf32>
    %c0_7 = arith.constant 0 : index
    %c0_8 = arith.constant 0 : index
    %10 = vector.load %arg4[%c0_7, %c0_8] : memref<32x4xf32, #tpu.memory_space<vmem>>, vector<32x4xf32>
    %cst_9 = arith.constant dense<0.000000e+00> : vector<8x4xf32>
    %11 = tpu.matmul %9, %10, %cst_9 {dimension_numbers = #tpu.dot_dimension_numbers<[1], [0], [0], [1], [0, 0, 1, 1], [], []>} : vector<8x32xf32>, vector<32x4xf32>, vector<8x4xf32> -> vector<8x4xf32>
    %12 = tpu.transpose %11, [1, 0] : vector<8x4xf32> -> vector<4x8xf32>
    %c0_10 = arith.constant 0 : index
    %c0_11 = arith.constant 0 : index
    %13 = vector.load %arg5[%c0_10, %c0_11] : memref<8x8xf32, #tpu.memory_space<vmem>>, vector<8x8xf32>
    %cst_12 = arith.constant 0.000000e+00 : f32
    %14 = vector.broadcast %cst_12 : f32 to vector<8x8xf32>
    %15 = arith.cmpf ogt, %13, %14 : vector<8x8xf32>
    %16 = arith.extui %15 : vector<8x8xi1> to vector<8x8xi32>
    %17 = arith.sitofp %16 : vector<8x8xi32> to vector<8x8xf32>
    %18 = vector.extract_strided_slice %11 {offsets = [0, 0], sizes = [8, 1], strides = [1, 1]} : vector<8x4xf32> to vector<8x1xf32>
    %19 = vector.extract_strided_slice %12 {offsets = [0, 0], sizes = [1, 8], strides = [1, 1]} : vector<4x8xf32> to vector<1x8xf32>
    %20 = vector.broadcast %18 : vector<8x1xf32> to vector<8x8xf32>
    %21 = vector.broadcast %19 : vector<1x8xf32> to vector<8x8xf32>
    %22 = arith.addf %20, %21 : vector<8x8xf32>
    %cst_13 = arith.constant 0.000000e+00 : f32
    %23 = vector.broadcast %cst_13 : f32 to vector<8x8xf32>
    %24 = arith.cmpf ogt, %22, %23 : vector<8x8xf32>
    %cst_14 = arith.constant 2.000000e-01 : f32
    %25 = vector.broadcast %cst_14 : f32 to vector<8x8xf32>
    %26 = arith.mulf %25, %22 : vector<8x8xf32>
    %27 = arith.select %24, %22, %26 : vector<8x8xi1>, vector<8x8xf32>
    %cst_15 = arith.constant -1.000000e+30 : f32
    %28 = vector.broadcast %cst_15 : f32 to vector<8x8xf32>
    %29 = arith.select %15, %27, %28 : vector<8x8xi1>, vector<8x8xf32>
    %cst_16 = arith.constant dense<0xFF800000> : vector<8xf32>
    %30 = vector.multi_reduction <maximumf>, %29, %cst_16 [1] : vector<8x8xf32> to vector<8xf32>
    %31 = vector.shape_cast %30 : vector<8xf32> to vector<8x1xf32>
    %32 = vector.broadcast %31 : vector<8x1xf32> to vector<8x8xf32>
    %33 = arith.subf %29, %32 : vector<8x8xf32>
    %34 = math.exp %33 : vector<8x8xf32>
    %35 = arith.mulf %34, %17 : vector<8x8xf32>
    %cst_17 = arith.constant dense<0.000000e+00> : vector<8xf32>
    %36 = vector.multi_reduction <add>, %35, %cst_17 [1] : vector<8x8xf32> to vector<8xf32>
    %37 = vector.shape_cast %36 : vector<8xf32> to vector<8x1xf32>
    %cst_18 = arith.constant 9.99999968E-21 : f32
    %38 = vector.broadcast %cst_18 : f32 to vector<8x1xf32>
    %39 = arith.maximumf %37, %38 : vector<8x1xf32>
    %40 = vector.broadcast %39 : vector<8x1xf32> to vector<8x8xf32>
    %41 = arith.divf %35, %40 : vector<8x8xf32>
    %c0_19 = arith.constant 0 : index
    %c0_20 = arith.constant 0 : index
    %c0_21 = arith.constant 0 : index
    %c0_22 = arith.constant 0 : index
    %42 = vector.load %arg7[%c0_19, %c0_20, %c0_21, %c0_22] : memref<1x4x8x8xf32, #tpu.memory_space<vmem>>, vector<1x1x8x8xf32>
    %43 = vector.shape_cast %42 : vector<1x1x8x8xf32> to vector<8x8xf32>
    %44 = vector.shape_cast %41 : vector<8x8xf32> to vector<1x1x8x8xf32>
    tpu.vector_store %arg7[%c0_19, %c0_20, %c0_21, %c0_22], %44 {strides = array<i32>} : memref<1x4x8x8xf32, #tpu.memory_space<vmem>>, vector<1x1x8x8xf32>,
    %45 = vector.extract_strided_slice %9 {offsets = [0, 0], sizes = [8, 8], strides = [1, 1]} : vector<8x32xf32> to vector<8x8xf32>
    %cst_23 = arith.constant dense<0.000000e+00> : vector<8x8xf32>
    %46 = tpu.matmul %41, %45, %cst_23 {dimension_numbers = #tpu.dot_dimension_numbers<[1], [0], [0], [1], [0, 0, 1, 1], [], []>} : vector<8x8xf32>, vector<8x8xf32>, vector<8x8xf32> -> vector<8x8xf32>
    %47 = vector.extract_strided_slice %11 {offsets = [0, 1], sizes = [8, 1], strides = [1, 1]} : vector<8x4xf32> to vector<8x1xf32>
    %48 = vector.extract_strided_slice %12 {offsets = [1, 0], sizes = [1, 8], strides = [1, 1]} : vector<4x8xf32> to vector<1x8xf32>
    %49 = vector.broadcast %47 : vector<8x1xf32> to vector<8x8xf32>
    %50 = vector.broadcast %48 : vector<1x8xf32> to vector<8x8xf32>
    %51 = arith.addf %49, %50 : vector<8x8xf32>
    %cst_24 = arith.constant 0.000000e+00 : f32
    %52 = vector.broadcast %cst_24 : f32 to vector<8x8xf32>
    %53 = arith.cmpf ogt, %51, %52 : vector<8x8xf32>
    %cst_25 = arith.constant 2.000000e-01 : f32
    %54 = vector.broadcast %cst_25 : f32 to vector<8x8xf32>
    %55 = arith.mulf %54, %51 : vector<8x8xf32>
    %56 = arith.select %53, %51, %55 : vector<8x8xi1>, vector<8x8xf32>
    %cst_26 = arith.constant -1.000000e+30 : f32
    %57 = vector.broadcast %cst_26 : f32 to vector<8x8xf32>
    %58 = arith.select %15, %56, %57 : vector<8x8xi1>, vector<8x8xf32>
    %cst_27 = arith.constant dense<0xFF800000> : vector<8xf32>
    %59 = vector.multi_reduction <maximumf>, %58, %cst_27 [1] : vector<8x8xf32> to vector<8xf32>
    %60 = vector.shape_cast %59 : vector<8xf32> to vector<8x1xf32>
    %61 = vector.broadcast %60 : vector<8x1xf32> to vector<8x8xf32>
    %62 = arith.subf %58, %61 : vector<8x8xf32>
    %63 = math.exp %62 : vector<8x8xf32>
    %64 = arith.mulf %63, %17 : vector<8x8xf32>
    %cst_28 = arith.constant dense<0.000000e+00> : vector<8xf32>
    %65 = vector.multi_reduction <add>, %64, %cst_28 [1] : vector<8x8xf32> to vector<8xf32>
    %66 = vector.shape_cast %65 : vector<8xf32> to vector<8x1xf32>
    %cst_29 = arith.constant 9.99999968E-21 : f32
    %67 = vector.broadcast %cst_29 : f32 to vector<8x1xf32>
    %68 = arith.maximumf %66, %67 : vector<8x1xf32>
    %69 = vector.broadcast %68 : vector<8x1xf32> to vector<8x8xf32>
    %70 = arith.divf %64, %69 : vector<8x8xf32>
    %c0_30 = arith.constant 0 : index
    %c1 = arith.constant 1 : index
    %c0_31 = arith.constant 0 : index
    %c0_32 = arith.constant 0 : index
    %71 = vector.load %arg7[%c0_30, %c1, %c0_31, %c0_32] : memref<1x4x8x8xf32, #tpu.memory_space<vmem>>, vector<1x1x8x8xf32>
    %72 = vector.shape_cast %71 : vector<1x1x8x8xf32> to vector<8x8xf32>
    %73 = vector.shape_cast %70 : vector<8x8xf32> to vector<1x1x8x8xf32>
    tpu.vector_store %arg7[%c0_30, %c1, %c0_31, %c0_32], %73 {strides = array<i32>} : memref<1x4x8x8xf32, #tpu.memory_space<vmem>>, vector<1x1x8x8xf32>,
    %74 = vector.extract_strided_slice %9 {offsets = [0, 8], sizes = [8, 8], strides = [1, 1]} : vector<8x32xf32> to vector<8x8xf32>
    %cst_33 = arith.constant dense<0.000000e+00> : vector<8x8xf32>
    %75 = tpu.matmul %70, %74, %cst_33 {dimension_numbers = #tpu.dot_dimension_numbers<[1], [0], [0], [1], [0, 0, 1, 1], [], []>} : vector<8x8xf32>, vector<8x8xf32>, vector<8x8xf32> -> vector<8x8xf32>
    %76 = vector.extract_strided_slice %11 {offsets = [0, 2], sizes = [8, 1], strides = [1, 1]} : vector<8x4xf32> to vector<8x1xf32>
    %77 = vector.extract_strided_slice %12 {offsets = [2, 0], sizes = [1, 8], strides = [1, 1]} : vector<4x8xf32> to vector<1x8xf32>
    %78 = vector.broadcast %76 : vector<8x1xf32> to vector<8x8xf32>
    %79 = vector.broadcast %77 : vector<1x8xf32> to vector<8x8xf32>
    %80 = arith.addf %78, %79 : vector<8x8xf32>
    %cst_34 = arith.constant 0.000000e+00 : f32
    %81 = vector.broadcast %cst_34 : f32 to vector<8x8xf32>
    %82 = arith.cmpf ogt, %80, %81 : vector<8x8xf32>
    %cst_35 = arith.constant 2.000000e-01 : f32
    %83 = vector.broadcast %cst_35 : f32 to vector<8x8xf32>
    %84 = arith.mulf %83, %80 : vector<8x8xf32>
    %85 = arith.select %82, %80, %84 : vector<8x8xi1>, vector<8x8xf32>
    %cst_36 = arith.constant -1.000000e+30 : f32
    %86 = vector.broadcast %cst_36 : f32 to vector<8x8xf32>
    %87 = arith.select %15, %85, %86 : vector<8x8xi1>, vector<8x8xf32>
    %cst_37 = arith.constant dense<0xFF800000> : vector<8xf32>
    %88 = vector.multi_reduction <maximumf>, %87, %cst_37 [1] : vector<8x8xf32> to vector<8xf32>
    %89 = vector.shape_cast %88 : vector<8xf32> to vector<8x1xf32>
    %90 = vector.broadcast %89 : vector<8x1xf32> to vector<8x8xf32>
    %91 = arith.subf %87, %90 : vector<8x8xf32>
    %92 = math.exp %91 : vector<8x8xf32>
    %93 = arith.mulf %92, %17 : vector<8x8xf32>
    %cst_38 = arith.constant dense<0.000000e+00> : vector<8xf32>
    %94 = vector.multi_reduction <add>, %93, %cst_38 [1] : vector<8x8xf32> to vector<8xf32>
    %95 = vector.shape_cast %94 : vector<8xf32> to vector<8x1xf32>
    %cst_39 = arith.constant 9.99999968E-21 : f32
    %96 = vector.broadcast %cst_39 : f32 to vector<8x1xf32>
    %97 = arith.maximumf %95, %96 : vector<8x1xf32>
    %98 = vector.broadcast %97 : vector<8x1xf32> to vector<8x8xf32>
    %99 = arith.divf %93, %98 : vector<8x8xf32>
    %c0_40 = arith.constant 0 : index
    %c2 = arith.constant 2 : index
    %c0_41 = arith.constant 0 : index
    %c0_42 = arith.constant 0 : index
    %100 = vector.load %arg7[%c0_40, %c2, %c0_41, %c0_42] : memref<1x4x8x8xf32, #tpu.memory_space<vmem>>, vector<1x1x8x8xf32>
    %101 = vector.shape_cast %100 : vector<1x1x8x8xf32> to vector<8x8xf32>
    %102 = vector.shape_cast %99 : vector<8x8xf32> to vector<1x1x8x8xf32>
    tpu.vector_store %arg7[%c0_40, %c2, %c0_41, %c0_42], %102 {strides = array<i32>} : memref<1x4x8x8xf32, #tpu.memory_space<vmem>>, vector<1x1x8x8xf32>,
    %103 = vector.extract_strided_slice %9 {offsets = [0, 16], sizes = [8, 8], strides = [1, 1]} : vector<8x32xf32> to vector<8x8xf32>
    %cst_43 = arith.constant dense<0.000000e+00> : vector<8x8xf32>
    %104 = tpu.matmul %99, %103, %cst_43 {dimension_numbers = #tpu.dot_dimension_numbers<[1], [0], [0], [1], [0, 0, 1, 1], [], []>} : vector<8x8xf32>, vector<8x8xf32>, vector<8x8xf32> -> vector<8x8xf32>
    %105 = vector.extract_strided_slice %11 {offsets = [0, 3], sizes = [8, 1], strides = [1, 1]} : vector<8x4xf32> to vector<8x1xf32>
    %106 = vector.extract_strided_slice %12 {offsets = [3, 0], sizes = [1, 8], strides = [1, 1]} : vector<4x8xf32> to vector<1x8xf32>
    %107 = vector.broadcast %105 : vector<8x1xf32> to vector<8x8xf32>
    %108 = vector.broadcast %106 : vector<1x8xf32> to vector<8x8xf32>
    %109 = arith.addf %107, %108 : vector<8x8xf32>
    %cst_44 = arith.constant 0.000000e+00 : f32
    %110 = vector.broadcast %cst_44 : f32 to vector<8x8xf32>
    %111 = arith.cmpf ogt, %109, %110 : vector<8x8xf32>
    %cst_45 = arith.constant 2.000000e-01 : f32
    %112 = vector.broadcast %cst_45 : f32 to vector<8x8xf32>
    %113 = arith.mulf %112, %109 : vector<8x8xf32>
    %114 = arith.select %111, %109, %113 : vector<8x8xi1>, vector<8x8xf32>
    %cst_46 = arith.constant -1.000000e+30 : f32
    %115 = vector.broadcast %cst_46 : f32 to vector<8x8xf32>
    %116 = arith.select %15, %114, %115 : vector<8x8xi1>, vector<8x8xf32>
    %cst_47 = arith.constant dense<0xFF800000> : vector<8xf32>
    %117 = vector.multi_reduction <maximumf>, %116, %cst_47 [1] : vector<8x8xf32> to vector<8xf32>
    %118 = vector.shape_cast %117 : vector<8xf32> to vector<8x1xf32>
    %119 = vector.broadcast %118 : vector<8x1xf32> to vector<8x8xf32>
    %120 = arith.subf %116, %119 : vector<8x8xf32>
    %121 = math.exp %120 : vector<8x8xf32>
    %122 = arith.mulf %121, %17 : vector<8x8xf32>
    %cst_48 = arith.constant dense<0.000000e+00> : vector<8xf32>
    %123 = vector.multi_reduction <add>, %122, %cst_48 [1] : vector<8x8xf32> to vector<8xf32>
    %124 = vector.shape_cast %123 : vector<8xf32> to vector<8x1xf32>
    %cst_49 = arith.constant 9.99999968E-21 : f32
    %125 = vector.broadcast %cst_49 : f32 to vector<8x1xf32>
    %126 = arith.maximumf %124, %125 : vector<8x1xf32>
    %127 = vector.broadcast %126 : vector<8x1xf32> to vector<8x8xf32>
    %128 = arith.divf %122, %127 : vector<8x8xf32>
    %c0_50 = arith.constant 0 : index
    %c3 = arith.constant 3 : index
    %c0_51 = arith.constant 0 : index
    %c0_52 = arith.constant 0 : index
    %129 = vector.load %arg7[%c0_50, %c3, %c0_51, %c0_52] : memref<1x4x8x8xf32, #tpu.memory_space<vmem>>, vector<1x1x8x8xf32>
    %130 = vector.shape_cast %129 : vector<1x1x8x8xf32> to vector<8x8xf32>
    %131 = vector.shape_cast %128 : vector<8x8xf32> to vector<1x1x8x8xf32>
    tpu.vector_store %arg7[%c0_50, %c3, %c0_51, %c0_52], %131 {strides = array<i32>} : memref<1x4x8x8xf32, #tpu.memory_space<vmem>>, vector<1x1x8x8xf32>,
    %132 = vector.extract_strided_slice %9 {offsets = [0, 24], sizes = [8, 8], strides = [1, 1]} : vector<8x32xf32> to vector<8x8xf32>
    %cst_53 = arith.constant dense<0.000000e+00> : vector<8x8xf32>
    %133 = tpu.matmul %128, %132, %cst_53 {dimension_numbers = #tpu.dot_dimension_numbers<[1], [0], [0], [1], [0, 0, 1, 1], [], []>} : vector<8x8xf32>, vector<8x8xf32>, vector<8x8xf32> -> vector<8x8xf32>
    %134 = tpu.concatenate %46, %75, %104, %133 in 1 : vector<8x8xf32>, vector<8x8xf32>, vector<8x8xf32>, vector<8x8xf32> -> vector<8x32xf32>
    %c0_54 = arith.constant 0 : index
    %c0_55 = arith.constant 0 : index
    %c0_56 = arith.constant 0 : index
    %135 = vector.load %arg6[%c0_54, %c0_55, %c0_56] : memref<1x8x32xf32, #tpu.memory_space<vmem>>, vector<1x8x32xf32>
    %136 = vector.shape_cast %135 : vector<1x8x32xf32> to vector<8x32xf32>
    %137 = vector.shape_cast %134 : vector<8x32xf32> to vector<1x8x32xf32>
    tpu.vector_store %arg6[%c0_54, %c0_55, %c0_56], %137 {strides = array<i32>} : memref<1x8x32xf32, #tpu.memory_space<vmem>>, vector<1x8x32xf32>,
    return
  }
  func.func @transform_0(%arg0: i32) -> (i32, i32, i32) {
    %c0_i32 = arith.constant 0 : i32
    %c0_i32_0 = arith.constant 0 : i32
    %c0_i32_1 = arith.constant 0 : i32
    return %arg0, %c0_i32, %c0_i32_0 : i32, i32, i32
  }
  func.func @transform_1(%arg0: i32) -> (i32, i32) {
    %c0_i32 = arith.constant 0 : i32
    %c0_i32_0 = arith.constant 0 : i32
    %c0_i32_1 = arith.constant 0 : i32
    return %c0_i32, %c0_i32_0 : i32, i32
  }
  func.func @transform_2(%arg0: i32) -> (i32, i32) {
    %c0_i32 = arith.constant 0 : i32
    %c0_i32_0 = arith.constant 0 : i32
    %c0_i32_1 = arith.constant 0 : i32
    return %c0_i32, %c0_i32_0 : i32, i32
  }
  func.func @transform_3(%arg0: i32) -> (i32, i32) {
    %c0_i32 = arith.constant 0 : i32
    %c0_i32_0 = arith.constant 0 : i32
    %c0_i32_1 = arith.constant 0 : i32
    return %c0_i32, %c0_i32_0 : i32, i32
  }
  func.func @transform_4(%arg0: i32) -> (i32, i32) {
    %c0_i32 = arith.constant 0 : i32
    %c0_i32_0 = arith.constant 0 : i32
    %c0_i32_1 = arith.constant 0 : i32
    return %c0_i32, %c0_i32_0 : i32, i32
  }
  func.func @transform_5(%arg0: i32) -> (i32, i32, i32) {
    %c0_i32 = arith.constant 0 : i32
    %c0_i32_0 = arith.constant 0 : i32
    %c0_i32_1 = arith.constant 0 : i32
    return %arg0, %c0_i32, %c0_i32_0 : i32, i32, i32
  }
  func.func @transform_6(%arg0: i32) -> (i32, i32, i32, i32) {
    %c0_i32 = arith.constant 0 : i32
    %c0_i32_0 = arith.constant 0 : i32
    %c0_i32_1 = arith.constant 0 : i32
    %c0_i32_2 = arith.constant 0 : i32
    return %arg0, %c0_i32, %c0_i32_0, %c0_i32_1 : i32, i32, i32, i32
  }
}

</mosaic_0001>

<llo_original>
// kernel: tpu_custom_call.1
$region0: #{tpu_custom_call.1}
  #allocation0 [shape = 'u32[]', space=smem, size = 0x4, offset = 0x4, fixed_abs, tag = 'smem constant byte address 0x4 - core index']
  #allocation1 [shape = 'u32[144,128]{1,0:T(1,128)}', space=vmem, size = 0x12000, scoped, tag = 'internal scratch']
  %s0 = inlined_call_operand.vmem [shape: f32[2,8,16], index: 0, kind: input, shape index: {}]
  %s1 = inlined_call_operand.vmem [shape: f32[16,32], index: 1, kind: input, shape index: {}]
  %s2 = inlined_call_operand.hbm [shape: f32[16,32], index: 2, kind: input, shape index: {}]
  %s3 = inlined_call_operand.vmem [shape: f32[32,4], index: 3, kind: input, shape index: {}]
  %s4 = inlined_call_operand.vmem [shape: f32[8,8], index: 4, kind: input, shape index: {}]
  %s5 = inlined_call_operand.hbm [shape: f32[2,8,32], index: 5, kind: output, shape index: {0}]
  %s6 = inlined_call_operand.hbm [shape: f32[2,4,8,8], index: 6, kind: output, shape index: {1}]
  %7 = xla_tuple %s5, %s6
  %s8 = sld [smem:[#allocation0]]
  $region65: #{tpu_custom_call.1} parent=0
    _
  %s10 = ssub.s32 1, %s8
  %s11 = scalar_select 0, %s10, %s8
  $region1: #{tpu_custom_call.1} parent=0
    #allocation2 [shape = 'u8[8192]{0}', space=vmem, size = 0x2000, scoped, tag = 'input window, operand 2, single buffered']
    #allocation3 [shape = 's32[2]{0}', space=sflag, size = 0x8, scoped, tag = 'scoped memory for tpu_custom_call.1']
    #allocation4 [shape = 's32[2]{0}', space=sflag, size = 0x8, scoped, tag = 'scoped memory for tpu_custom_call.1']
    #allocation5 [shape = 'u8[8192]{0}', space=vmem, size = 0x2000, scoped, tag = 'output window, operand 0']
    #allocation6 [shape = 'u8[32768]{0}', space=vmem, size = 0x8000, scoped, tag = 'output window, operand 1']
    #allocation7 [shape = 's32[2]{0}', space=sflag, size = 0x8, scoped, tag = 'scoped memory for tpu_custom_call.1']
    %12 = vsyncpa [#allocation3], 0
    %13 = vsyncpa [#allocation4], 0
    %s14 = scalar_lea.sflag [#allocation4], 1
    %15 = vsyncpa %s14, 0
    %16 = vsyncpa [#allocation7], 0
    %s17 = scalar_lea.sflag [#allocation7], 1
    %18 = vsyncpa %s17, 0
    loop: start=0, step=1, limit=4
    $region2: #{tpu_custom_call.1} parent=1 // loop_pre_header
      _
    $region3: #{tpu_custom_call.1} parent=1 // loop_header
      %s20 = sphi 0, %s24
      %p21 = scmp.ge.s32.totalorder %s20, 4
      %s30 = sphi 0, %s32
      %s33 = sphi 0, %s30
      %s34 = sphi 0, %s33
      %s50 = sphi 0, %s34
      %s54 = sphi 0, %s54
      %s56 = sphi 0, %s54
      %s57 = sphi 0, %s56
      %s71 = sphi 0, %s57
      %s75 = sphi 0, %s75
      %s77 = sphi 0, %s75
      %s78 = sphi 0, %s77
      %s92 = sphi 0, %s78
      %s96 = sphi 0, %s96
      %s98 = sphi 0, %s96
      %s99 = sphi 0, %s98
      %s113 = sphi 0, %s99
      %s117 = sphi 0, %s117
      %s119 = sphi 0, %s117
      %s120 = sphi 0, %s119
      %s134 = sphi 0, %s120
      %s140 = sphi 0, %s142
      %s143 = sphi 0, %s140
      %s144 = sphi 0, %s143
      %s160 = sphi 0, %s144
      %s166 = sphi 0, %s168
      %s169 = sphi 0, %s166
      %s170 = sphi 0, %s169
      %s186 = sphi 0, %s170
    $region4: #{tpu_custom_call.1} parent=1 // loop_header_branch
      %23 = sbr.rel (%p21) target = $region8
    $region5: #{tpu_custom_call.1} parent=1 // loop_body
      %s25 = ssub.s32 %s20, 1
      %s26 = ssub.s32 %s20, 2
      %s27 = sadd.s32 %s20, 1
      %s28 = ssub.s32 %s20, %s27
      %p29 = scmp.eq.s32.totalorder %s28, 0
      %s31 = sadd.s32 %s30, 1
      %s32 = scalar_select %p29, %s30, %s31
      %p35 = pneg %p29
      %p36 = scmp.eq.s32.totalorder %s20, 1
      %p37 = por %p35, %p36
      %p38 = scmp.ne.s32.totalorder %s30, %s33
      %p39 = scmp.eq.s32.totalorder %s20, 0
      %p40 = por %p38, %p39
      %p41 = scmp.ne.s32.totalorder %s30, %s33
      %p42 = scmp.eq.s32.totalorder %s25, 1
      %p43 = por %p41, %p42
      %p44 = scmp.ne.s32.totalorder %s33, %s34
      %p45 = scmp.eq.s32.totalorder %s25, 0
      %p46 = por %p44, %p45
      %p47 = scmp.ne.s32.totalorder %s33, %s34
      %p48 = scmp.eq.s32.totalorder %s26, 1
      %p49 = por %p47, %p48
      %p51 = scmp.ne.s32.totalorder %s34, %s50
      %p52 = scmp.eq.s32.totalorder %s26, 0
      %p53 = por %p51, %p52
      %s55 = sadd.s32 %s54, 1
      %p58 = scmp.eq.s32.totalorder %s20, 1
      %p59 = scmp.ne.s32.totalorder %s54, %s56
      %p60 = scmp.eq.s32.totalorder %s20, 0
      %p61 = por %p59, %p60
      %p62 = scmp.ne.s32.totalorder %s54, %s56
      %p63 = scmp.eq.s32.totalorder %s25, 1
      %p64 = por %p62, %p63
      %p65 = scmp.ne.s32.totalorder %s56, %s57
      %p66 = scmp.eq.s32.totalorder %s25, 0
      %p67 = por %p65, %p66
      %p68 = scmp.ne.s32.totalorder %s56, %s57
      %p69 = scmp.eq.s32.totalorder %s26, 1
      %p70 = por %p68, %p69
      %p72 = scmp.ne.s32.totalorder %s57, %s71
      %p73 = scmp.eq.s32.totalorder %s26, 0
      %p74 = por %p72, %p73
      %s76 = sadd.s32 %s75, 1
      %p79 = scmp.eq.s32.totalorder %s20, 1
      %p80 = scmp.ne.s32.totalorder %s75, %s77
      %p81 = scmp.eq.s32.totalorder %s20, 0
      %p82 = por %p80, %p81
      %p83 = scmp.ne.s32.totalorder %s75, %s77
      %p84 = scmp.eq.s32.totalorder %s25, 1
      %p85 = por %p83, %p84
      %p86 = scmp.ne.s32.totalorder %s77, %s78
      %p87 = scmp.eq.s32.totalorder %s25, 0
      %p88 = por %p86, %p87
      %p89 = scmp.ne.s32.totalorder %s77, %s78
      %p90 = scmp.eq.s32.totalorder %s26, 1
      %p91 = por %p89, %p90
      %p93 = scmp.ne.s32.totalorder %s78, %s92
      %p94 = scmp.eq.s32.totalorder %s26, 0
      %p95 = por %p93, %p94
      %s97 = sadd.s32 %s96, 1
      %p100 = scmp.eq.s32.totalorder %s20, 1
      %p101 = scmp.ne.s32.totalorder %s96, %s98
      %p102 = scmp.eq.s32.totalorder %s20, 0
      %p103 = por %p101, %p102
      %p104 = scmp.ne.s32.totalorder %s96, %s98
      %p105 = scmp.eq.s32.totalorder %s25, 1
      %p106 = por %p104, %p105
      %p107 = scmp.ne.s32.totalorder %s98, %s99
      %p108 = scmp.eq.s32.totalorder %s25, 0
      %p109 = por %p107, %p108
      %p110 = scmp.ne.s32.totalorder %s98, %s99
      %p111 = scmp.eq.s32.totalorder %s26, 1
      %p112 = por %p110, %p111
      %p114 = scmp.ne.s32.totalorder %s99, %s113
      %p115 = scmp.eq.s32.totalorder %s26, 0
      %p116 = por %p114, %p115
      %s118 = sadd.s32 %s117, 1
      %p121 = scmp.eq.s32.totalorder %s20, 1
      %p122 = scmp.ne.s32.totalorder %s117, %s119
      %p123 = scmp.eq.s32.totalorder %s20, 0
      %p124 = por %p122, %p123
      %p125 = scmp.ne.s32.totalorder %s117, %s119
      %p126 = scmp.eq.s32.totalorder %s25, 1
      %p127 = por %p125, %p126
      %p128 = scmp.ne.s32.totalorder %s119, %s120
      %p129 = scmp.eq.s32.totalorder %s25, 0
      %p130 = por %p128, %p129
      %p131 = scmp.ne.s32.totalorder %s119, %s120
      %p132 = scmp.eq.s32.totalorder %s26, 1
      %p133 = por %p131, %p132
      %p135 = scmp.ne.s32.totalorder %s120, %s134
      %p136 = scmp.eq.s32.totalorder %s26, 0
      %p137 = por %p135, %p136
      %s138 = ssub.s32 %s20, %s27
      %p139 = scmp.eq.s32.totalorder %s138, 0
      %s141 = sadd.s32 %s140, 1
      %s142 = scalar_select %p139, %s140, %s141
      %p145 = pneg %p139
      %p146 = scmp.eq.s32.totalorder %s20, 1
      %p147 = por %p145, %p146
      %p148 = scmp.ne.s32.totalorder %s140, %s143
      %p149 = scmp.eq.s32.totalorder %s20, 0
      %p150 = por %p148, %p149
      %p151 = scmp.ne.s32.totalorder %s140, %s143
      %p152 = scmp.eq.s32.totalorder %s25, 1
      %p153 = por %p151, %p152
      %p154 = scmp.ne.s32.totalorder %s143, %s144
      %p155 = scmp.eq.s32.totalorder %s25, 0
      %p156 = por %p154, %p155
      %p157 = scmp.ne.s32.totalorder %s143, %s144
      %p158 = scmp.eq.s32.totalorder %s26, 1
      %p159 = por %p157, %p158
      %p161 = scmp.ne.s32.totalorder %s144, %s160
      %p162 = scmp.eq.s32.totalorder %s26, 0
      %p163 = por %p161, %p162
      %s164 = ssub.s32 %s20, %s27
      %p165 = scmp.eq.s32.totalorder %s164, 0
      %s167 = sadd.s32 %s166, 1
      %s168 = scalar_select %p165, %s166, %s167
      %p171 = pneg %p165
      %p172 = scmp.eq.s32.totalorder %s20, 1
      %p173 = por %p171, %p172
      %p174 = scmp.ne.s32.totalorder %s166, %s169
      %p175 = scmp.eq.s32.totalorder %s20, 0
      %p176 = por %p174, %p175
      %p177 = scmp.ne.s32.totalorder %s166, %s169
      %p178 = scmp.eq.s32.totalorder %s25, 1
      %p179 = por %p177, %p178
      %p180 = scmp.ne.s32.totalorder %s169, %s170
      %p181 = scmp.eq.s32.totalorder %s25, 0
      %p182 = por %p180, %p181
      %p183 = scmp.ne.s32.totalorder %s169, %s170
      %p184 = scmp.eq.s32.totalorder %s26, 1
      %p185 = por %p183, %p184
      %p187 = scmp.ne.s32.totalorder %s170, %s186
      %p188 = scmp.eq.s32.totalorder %s26, 0
      %p189 = por %p187, %p188
      %p190 = scmp.le.s32.totalorder 1, %s20
      %p191 = scmp.lt.s32.totalorder %s20, 3
      %p192 = pnand %p190, %p191
      %p193 = pneg %p192
      // Predicated region
      $region9: #{tpu_custom_call.1} parent=5 // pred_check
        _
      $region10: #{tpu_custom_call.1} parent=5 // pred_check_branch
        %195 = sbr.rel (%p192) target = $region12
      $region11: #{tpu_custom_call.1} parent=5 // pred_region
        %s196 = ssub.s32 %s20, 1
        // Predicated region
        $region13: #{tpu_custom_call.1} parent=11 // pred_check
          %p197 = pneg %p67
        $region14: #{tpu_custom_call.1} parent=11 // pred_check_branch
          %199 = sbr.rel (%p197) target = $region16
        $region15: #{tpu_custom_call.1} parent=11 // pred_region
          _
        $region16: #{tpu_custom_call.1} parent=11 // pred_fallthru
          _
        // Predicated region
        $region17: #{tpu_custom_call.1} parent=11 // pred_check
          %p200 = pneg %p88
        $region18: #{tpu_custom_call.1} parent=11 // pred_check_branch
          %202 = sbr.rel (%p200) target = $region20
        $region19: #{tpu_custom_call.1} parent=11 // pred_region
          %s204 = ssub.s32 256, 256
          %205 = vsyncadd [#allocation3], %s204
          %s206 = sshll.u32 [#allocation2], 4
          %s207 = int_to_ptr.vmem [resolvable:$true] %s206
          %212 = dma.hbm_to_vmem [thread:$0]  %s2, 256, %s207, [#allocation3], 128, 128, 8
        $region20: #{tpu_custom_call.1} parent=11 // pred_fallthru
          _
        // Predicated region
        $region21: #{tpu_custom_call.1} parent=11 // pred_check
          %p213 = pneg %p109
        $region22: #{tpu_custom_call.1} parent=11 // pred_check_branch
          %215 = sbr.rel (%p213) target = $region24
        $region23: #{tpu_custom_call.1} parent=11 // pred_region
          _
        $region24: #{tpu_custom_call.1} parent=11 // pred_fallthru
          _
        // Predicated region
        $region25: #{tpu_custom_call.1} parent=11 // pred_check
          %p216 = pneg %p130
        $region26: #{tpu_custom_call.1} parent=11 // pred_check_branch
          %218 = sbr.rel (%p216) target = $region28
        $region27: #{tpu_custom_call.1} parent=11 // pred_region
          _
        $region28: #{tpu_custom_call.1} parent=11 // pred_fallthru
          _
      $region12: #{tpu_custom_call.1} parent=5 // pred_fallthru
        _
      %p219 = scmp.lt.s32.totalorder %s20, 2
      // Predicated region
      $region29: #{tpu_custom_call.1} parent=5 // pred_check
        %p220 = pneg %p219
      $region30: #{tpu_custom_call.1} parent=5 // pred_check_branch
        %222 = sbr.rel (%p220) target = $region32
      $region31: #{tpu_custom_call.1} parent=5 // pred_region
        // Predicated region
        $region33: #{tpu_custom_call.1} parent=31 // pred_check
          %p223 = pneg %p40
        $region34: #{tpu_custom_call.1} parent=31 // pred_check_branch
          %225 = sbr.rel (%p223) target = $region36
        $region35: #{tpu_custom_call.1} parent=31 // pred_region
          %p226 = scmp.lt.s32.totalorder %s20, 1
          %s227 = scalar_select %p226, %s20, 1
          %s228 = smul.addr %s227, 8
          %s229 = scalar_lea.vmem %s0, %s228
        $region36: #{tpu_custom_call.1} parent=31 // pred_fallthru
          _
      $region32: #{tpu_custom_call.1} parent=5 // pred_fallthru
        _
      %p230 = scmp.le.s32.totalorder 1, %s20
      %p231 = scmp.lt.s32.totalorder %s20, 3
      %p232 = pnand %p230, %p231
      %p233 = pneg %p232
      // Predicated region
      $region37: #{tpu_custom_call.1} parent=5 // pred_check
        _
      $region38: #{tpu_custom_call.1} parent=5 // pred_check_branch
        %235 = sbr.rel (%p232) target = $region40
      $region39: #{tpu_custom_call.1} parent=5 // pred_region
        %s236 = ssub.s32 %s20, 1
        // Predicated region
        $region41: #{tpu_custom_call.1} parent=39 // pred_check
          %p237 = pneg %p88
        $region42: #{tpu_custom_call.1} parent=39 // pred_check_branch
          %239 = sbr.rel (%p237) target = $region44
        $region43: #{tpu_custom_call.1} parent=39 // pred_region
          %240 = dma.done [#allocation3], 256
        $region44: #{tpu_custom_call.1} parent=39 // pred_fallthru
          _
        %p241 = scmp.lt.s32.totalorder %s25, 1
        %s242 = scalar_select %p241, %s25, 1
        %s243 = smul.addr %s242, 8
        %s244 = scalar_lea.vmem %s0, %s243
        %p245 = pneg %p46
        %p246 = pneg %p43
        %p247 = pneg %p67
        %p248 = pneg %p64
        %p249 = pneg %p88
        %p250 = pneg %p85
        %p251 = pneg %p109
        %p252 = pneg %p106
        %p253 = pneg %p130
        %p254 = pneg %p127
        %p255 = pneg %p156
        %p256 = pneg %p153
        %s257 = sand.u32 %s143, 1
        %s258 = scalar_lea.sflag [#allocation4], %s257
        %s259 = sand.u32 %s143, 1
        %s260 = smul.addr %s259, 8
        %s261 = scalar_lea.vmem [#allocation5], %s260
        %p262 = pneg %p182
        %p263 = pneg %p179
        %s264 = sand.u32 %s169, 1
        %s265 = scalar_lea.sflag [#allocation7], %s264
        %s266 = sand.u32 %s169, 1
        %s267 = smul.addr %s266, 32
        %s268 = scalar_lea.vmem [#allocation6], %s267
        %p269 = scmp.lt.s32.totalorder %s25, 1
        %s270 = scalar_select %p269, %s25, 1
        %s271 = smul.addr %s270, 8
        %s272 = scalar_lea.vmem %s0, %s271
        %v273 = vld [vmem:[%s272] sm:$0xff]
        %v274 = vld [vmem:[%s1] sm:$0xff]
        %v275 = vld [vmem:[%s1 + $0x8] sm:$0xff]
        %vm276 = vcmask 130048
        %v278 = vsel %vm276, %v273, 0
        %280 = vmatprep.subr.mxu0 0.0
        %281 = vmatpush1.msra.mxu0 %v274
        %282 = vmatprep.subr.mxu0 0.0
        %283 = vmatpush1.msra.mxu0 %v275
        %284 = vmatprep.subr.mxu0 0.0
        %285 = vmatpush1.msra.mxu0 0.0
        %286 = vmatprep.subr.mxu0 0.0
        %287 = vmatpush1.msra.mxu0 0.0
        %288 = vmatprep.subr.mxu0 0.0
        %289 = vmatpush1.msra.mxu0 0.0
        %290 = vmatprep.subr.mxu0 0.0
        %291 = vmatpush1.msra.mxu0 0.0
        %292 = vmatprep.subr.mxu0 0.0
        %293 = vmatpush1.msra.mxu0 0.0
        %294 = vmatprep.subr.mxu0 0.0
        %295 = vmatpush1.msra.mxu0 0.0
        %296 = vmatprep.subr.mxu0 0.0
        %297 = vmatpush1.msra.mxu0 0.0
        %298 = vmatprep.subr.mxu0 0.0
        %299 = vmatpush1.msra.mxu0 0.0
        %300 = vmatprep.subr.mxu0 0.0
        %301 = vmatpush1.msra.mxu0 0.0
        %302 = vmatprep.subr.mxu0 0.0
        %303 = vmatpush1.msra.mxu0 0.0
        %304 = vmatprep.subr.mxu0 0.0
        %305 = vmatpush1.msra.mxu0 0.0
        %306 = vmatprep.subr.mxu0 0.0
        %307 = vmatpush1.msra.mxu0 0.0
        %308 = vmatprep.subr.mxu0 0.0
        %309 = vmatpush1.msra.mxu0 0.0
        %310 = vmatprep.subr.mxu0 0.0
        %311 = vmatpush1.msra.mxu0 0.0
        %312 = vmatprep.subr.mxu0 0.0
        %313 = vmatpush1.msra.mxu0 0.0
        %314 = vmatprep.subr.mxu0 0.0
        %315 = vmatpush1.msra.mxu0 0.0
        %316 = vmatprep.subr.mxu0 0.0
        %317 = vmatpush1.msra.mxu0 0.0
        %318 = vmatprep.subr.mxu0 0.0
        %319 = vmatpush1.msra.mxu0 0.0
        %320 = vmatprep.subr.mxu0 0.0
        %321 = vmatpush1.msra.mxu0 0.0
        %322 = vmatprep.subr.mxu0 0.0
        %323 = vmatpush1.msra.mxu0 0.0
        %324 = vmatprep.subr.mxu0 0.0
        %325 = vmatpush1.msra.mxu0 0.0
        %326 = vmatprep.subr.mxu0 0.0
        %327 = vmatpush1.msra.mxu0 0.0
        %328 = vmatprep.subr.mxu0 0.0
        %329 = vmatpush1.msra.mxu0 0.0
        %330 = vmatprep.subr.mxu0 0.0
        %331 = vmatpush1.msra.mxu0 0.0
        %332 = vmatprep.subr.mxu0 0.0
        %333 = vmatpush1.msra.mxu0 0.0
        %334 = vmatprep.subr.mxu0 0.0
        %335 = vmatpush1.msra.mxu0 0.0
        %336 = vmatprep.subr.mxu0 0.0
        %337 = vmatpush1.msra.mxu0 0.0
        %338 = vmatprep.subr.mxu0 0.0
        %339 = vmatpush1.msra.mxu0 0.0
        %340 = vmatprep.subr.mxu0 0.0
        %341 = vmatpush1.msra.mxu0 0.0
        %342 = vmatprep.subr.mxu0 0.0
        %343 = vmatpush1.msra.mxu0 0.0
        %344 = vmatprep.mubr.f32.mxu0 0.0
        %345 = vmatmul.mubr.f32.gmra.mrb[0].mxu0 %v278
        %v346 = vpop.f32.mrb[0].mxu0
        %v347 = vadd.f32 0.0, %v346
        %v348 = vpop.f32.mrb[0].mxu0
        %349 = vdwg.mxu0
        %v350 = vld [vmem:[#allocation2] sm:$0xff]
        %v351 = vld [vmem:[#allocation2 + $0x8] sm:$0xff]
        %352 = vmatprep.subr.mxu0 0.0
        %353 = vmatpush1.msra.mxu0 %v350
        %354 = vmatprep.subr.mxu0 0.0
        %355 = vmatpush1.msra.mxu0 %v351
        %356 = vmatprep.subr.mxu0 0.0
        %357 = vmatpush1.msra.mxu0 0.0
        %358 = vmatprep.subr.mxu0 0.0
        %359 = vmatpush1.msra.mxu0 0.0
        %360 = vmatprep.subr.mxu0 0.0
        %361 = vmatpush1.msra.mxu0 0.0
        %362 = vmatprep.subr.mxu0 0.0
        %363 = vmatpush1.msra.mxu0 0.0
        %364 = vmatprep.subr.mxu0 0.0
        %365 = vmatpush1.msra.mxu0 0.0
        %366 = vmatprep.subr.mxu0 0.0
        %367 = vmatpush1.msra.mxu0 0.0
        %368 = vmatprep.subr.mxu0 0.0
        %369 = vmatpush1.msra.mxu0 0.0
        %370 = vmatprep.subr.mxu0 0.0
        %371 = vmatpush1.msra.mxu0 0.0
        %372 = vmatprep.subr.mxu0 0.0
        %373 = vmatpush1.msra.mxu0 0.0
        %374 = vmatprep.subr.mxu0 0.0
        %375 = vmatpush1.msra.mxu0 0.0
        %376 = vmatprep.subr.mxu0 0.0
        %377 = vmatpush1.msra.mxu0 0.0
        %378 = vmatprep.subr.mxu0 0.0
        %379 = vmatpush1.msra.mxu0 0.0
        %380 = vmatprep.subr.mxu0 0.0
        %381 = vmatpush1.msra.mxu0 0.0
        %382 = vmatprep.subr.mxu0 0.0
        %383 = vmatpush1.msra.mxu0 0.0
        %384 = vmatprep.subr.mxu0 0.0
        %385 = vmatpush1.msra.mxu0 0.0
        %386 = vmatprep.subr.mxu0 0.0
        %387 = vmatpush1.msra.mxu0 0.0
        %388 = vmatprep.subr.mxu0 0.0
        %389 = vmatpush1.msra.mxu0 0.0
        %390 = vmatprep.subr.mxu0 0.0
        %391 = vmatpush1.msra.mxu0 0.0
        %392 = vmatprep.subr.mxu0 0.0
        %393 = vmatpush1.msra.mxu0 0.0
        %394 = vmatprep.subr.mxu0 0.0
        %395 = vmatpush1.msra.mxu0 0.0
        %396 = vmatprep.subr.mxu0 0.0
        %397 = vmatpush1.msra.mxu0 0.0
        %398 = vmatprep.subr.mxu0 0.0
        %399 = vmatpush1.msra.mxu0 0.0
        %400 = vmatprep.subr.mxu0 0.0
        %401 = vmatpush1.msra.mxu0 0.0
        %402 = vmatprep.subr.mxu0 0.0
        %403 = vmatpush1.msra.mxu0 0.0
        %404 = vmatprep.subr.mxu0 0.0
        %405 = vmatpush1.msra.mxu0 0.0
        %406 = vmatprep.subr.mxu0 0.0
        %407 = vmatpush1.msra.mxu0 0.0
        %408 = vmatprep.subr.mxu0 0.0
        %409 = vmatpush1.msra.mxu0 0.0
        %410 = vmatprep.subr.mxu0 0.0
        %411 = vmatpush1.msra.mxu0 0.0
        %412 = vmatprep.subr.mxu0 0.0
        %413 = vmatpush1.msra.mxu0 0.0
        %414 = vmatprep.subr.mxu0 0.0
        %415 = vmatpush1.msra.mxu0 0.0
        %416 = vmatprep.mubr.f32.mxu0 0.0
        %417 = vmatmul.mubr.f32.gmra.mrb[0].mxu0 %v278
        %v418 = vpop.f32.mrb[0].mxu0
        %v419 = vadd.f32 0.0, %v418
        %v420 = vpop.f32.mrb[0].mxu0
        %421 = vdwg.mxu0
        %v422 = vlaneseq
        %v423 = vshrl.u32 %v422, 7
        %vm424 = vcmp.lt.s32.totalorder %v423, 4
        %v425 = vsel %vm424, %v347, %v419
        %v426 = vld [vmem:[%s3] sm:$0xff]
        %v427 = vld [vmem:[%s3 + $0x8] sm:$0xff]
        %v428 = vld [vmem:[%s3 + $0x10] sm:$0xff]
        %v429 = vld [vmem:[%s3 + $0x18] sm:$0xff]
        %vm430 = vcmask 261120
        %v432 = vsel %vm430, %v425, 0
        %434 = vmatprep.subr.mxu0 0.0
        %435 = vmatpush1.msra.mxu0 %v426
        %436 = vmatprep.subr.mxu0 0.0
        %437 = vmatpush1.msra.mxu0 %v427
        %438 = vmatprep.subr.mxu0 0.0
        %439 = vmatpush1.msra.mxu0 %v428
        %440 = vmatprep.subr.mxu0 0.0
        %441 = vmatpush1.msra.mxu0 %v429
        %442 = vmatprep.subr.mxu0 0.0
        %443 = vmatpush1.msra.mxu0 0.0
        %444 = vmatprep.subr.mxu0 0.0
        %445 = vmatpush1.msra.mxu0 0.0
        %446 = vmatprep.subr.mxu0 0.0
        %447 = vmatpush1.msra.mxu0 0.0
        %448 = vmatprep.subr.mxu0 0.0
        %449 = vmatpush1.msra.mxu0 0.0
        %450 = vmatprep.subr.mxu0 0.0
        %451 = vmatpush1.msra.mxu0 0.0
        %452 = vmatprep.subr.mxu0 0.0
        %453 = vmatpush1.msra.mxu0 0.0
        %454 = vmatprep.subr.mxu0 0.0
        %455 = vmatpush1.msra.mxu0 0.0
        %456 = vmatprep.subr.mxu0 0.0
        %457 = vmatpush1.msra.mxu0 0.0
        %458 = vmatprep.subr.mxu0 0.0
        %459 = vmatpush1.msra.mxu0 0.0
        %460 = vmatprep.subr.mxu0 0.0
        %461 = vmatpush1.msra.mxu0 0.0
        %462 = vmatprep.subr.mxu0 0.0
        %463 = vmatpush1.msra.mxu0 0.0
        %464 = vmatprep.subr.mxu0 0.0
        %465 = vmatpush1.msra.mxu0 0.0
        %466 = vmatprep.subr.mxu0 0.0
        %467 = vmatpush1.msra.mxu0 0.0
        %468 = vmatprep.subr.mxu0 0.0
        %469 = vmatpush1.msra.mxu0 0.0
        %470 = vmatprep.subr.mxu0 0.0
        %471 = vmatpush1.msra.mxu0 0.0
        %472 = vmatprep.subr.mxu0 0.0
        %473 = vmatpush1.msra.mxu0 0.0
        %474 = vmatprep.subr.mxu0 0.0
        %475 = vmatpush1.msra.mxu0 0.0
        %476 = vmatprep.subr.mxu0 0.0
        %477 = vmatpush1.msra.mxu0 0.0
        %478 = vmatprep.subr.mxu0 0.0
        %479 = vmatpush1.msra.mxu0 0.0
        %480 = vmatprep.subr.mxu0 0.0
        %481 = vmatpush1.msra.mxu0 0.0
        %482 = vmatprep.subr.mxu0 0.0
        %483 = vmatpush1.msra.mxu0 0.0
        %484 = vmatprep.subr.mxu0 0.0
        %485 = vmatpush1.msra.mxu0 0.0
        %486 = vmatprep.subr.mxu0 0.0
        %487 = vmatpush1.msra.mxu0 0.0
        %488 = vmatprep.subr.mxu0 0.0
        %489 = vmatpush1.msra.mxu0 0.0
        %490 = vmatprep.subr.mxu0 0.0
        %491 = vmatpush1.msra.mxu0 0.0
        %492 = vmatprep.subr.mxu0 0.0
        %493 = vmatpush1.msra.mxu0 0.0
        %494 = vmatprep.subr.mxu0 0.0
        %495 = vmatpush1.msra.mxu0 0.0
        %496 = vmatprep.subr.mxu0 0.0
        %497 = vmatpush1.msra.mxu0 0.0
        %498 = vmatprep.mubr.f32.mxu0 0.0
        %499 = vmatmul.mubr.f32.gmra.mrb[0].mxu0 %v432
        %v500 = vpop.f32.mrb[0].mxu0
        %v501 = vadd.f32 0.0, %v500
        %v502 = vpop.f32.mrb[0].mxu0
        %503 = vdwg.mxu0
        %504 = vxpose.xlu0.b32.start [1/16] %v501, 128
        %505 = vxpose.xlu0.b32.cont [2/16] 0.0, 128
        %506 = vxpose.xlu0.b32.cont [3/16] 0.0, 128
        %507 = vxpose.xlu0.b32.cont [4/16] 0.0, 128
        %508 = vxpose.xlu0.b32.cont [5/16] 0.0, 128
        %509 = vxpose.xlu0.b32.cont [6/16] 0.0, 128
        %510 = vxpose.xlu0.b32.cont [7/16] 0.0, 128
        %511 = vxpose.xlu0.b32.cont [8/16] 0.0, 128
        %512 = vxpose.xlu0.b32.cont [9/16] 0.0, 128
        %513 = vxpose.xlu0.b32.cont [10/16] 0.0, 128
        %514 = vxpose.xlu0.b32.cont [11/16] 0.0, 128
        %515 = vxpose.xlu0.b32.cont [12/16] 0.0, 128
        %516 = vxpose.xlu0.b32.cont [13/16] 0.0, 128
        %517 = vxpose.xlu0.b32.cont [14/16] 0.0, 128
        %518 = vxpose.xlu0.b32.cont [15/16] 0.0, 128
        %519 = vxpose.xlu0.b32.end [16/16] 0.0, 128
        %v520 = vpop.trf.xlu0
        %v521 = vpop.trf.xlu0
        %v522 = vpop.trf.xlu0
        %v523 = vpop.trf.xlu0
        %v524 = vpop.trf.xlu0
        %v525 = vpop.trf.xlu0
        %v526 = vpop.trf.xlu0
        %v527 = vpop.trf.xlu0
        %v528 = vpop.trf.xlu0
        %v529 = vpop.trf.xlu0
        %v530 = vpop.trf.xlu0
        %v531 = vpop.trf.xlu0
        %v532 = vpop.trf.xlu0
        %v533 = vpop.trf.xlu0
        %v534 = vpop.trf.xlu0
        %v535 = vpop.trf.xlu0
        %v536 = vld [vmem:[%s4] sm:$0xff]
        %vm537 = vcmp.gt.f32.partialorder %v536, 0.0
        %v538 = vsel %vm537, 1, 0
        %v539 = vcvt.s32.f32 %v538
        %541 = vset.pattern.permute.xlu0 0
        %542 = vperm.xlu0 %541, %v501
        %v543 = vpop.permute.xlu0 %542
        %v545 = vlaneseq
        %v546 = vshrl.u32 %v545, 7
        %v547 = vsub.s32 0, %v546
        %v548 = vrot.slane %v520, %v547
        %v549 = vadd.f32 %v543, %v548
        %vm550 = vcmp.gt.f32.partialorder %v549, 0.0
        %v551 = vmul.f32 %v549, 0.2
        %v552 = vsel %vm550, %v549, %v551
        %v553 = vsel %vm537, %v552, -1e+30
        %vm554 = vcmask 64512
        %v555 = vsel %vm554, %v553, -inf
        %556 = vmax.xlane.f32.xlu0 %v555
        %v557 = vpop.xlane.xlu0 %556
        %v558 = vsub.f32 %v553, %v557
        %v559 = vmul.f32 %v558, 1.442695
        %v560 = vpow.pop %v559
        %v561 = vmul.f32 %v560, %v539
        %v562 = vsel %vm554, %v561, 0.0
        %563 = vadd.xlane.f32.xlu0 %v562
        %v564 = vpop.xlane.xlu0 %563
        %v565 = vmax.f32 %v564, 1e-20
        %v566 = vrcp.pop %v565
        %v567 = vmul.f32 %v561, %v566
        %568 = vst.msk [vmem:[%s268] sm:$0xff] %vm554, %v567
        %v570 = vsel %vm554, %v567, 0
        %572 = vmatprep.subr.mxu0 0.0
        %573 = vmatpush1.msra.mxu0 %v425
        %574 = vmatprep.subr.mxu0 0.0
        %575 = vmatpush1.msra.mxu0 0.0
        %576 = vmatprep.subr.mxu0 0.0
        %577 = vmatpush1.msra.mxu0 0.0
        %578 = vmatprep.subr.mxu0 0.0
        %579 = vmatpush1.msra.mxu0 0.0
        %580 = vmatprep.subr.mxu0 0.0
        %581 = vmatpush1.msra.mxu0 0.0
        %582 = vmatprep.subr.mxu0 0.0
        %583 = vmatpush1.msra.mxu0 0.0
        %584 = vmatprep.subr.mxu0 0.0
        %585 = vmatpush1.msra.mxu0 0.0
        %586 = vmatprep.subr.mxu0 0.0
        %587 = vmatpush1.msra.mxu0 0.0
        %588 = vmatprep.subr.mxu0 0.0
        %589 = vmatpush1.msra.mxu0 0.0
        %590 = vmatprep.subr.mxu0 0.0
        %591 = vmatpush1.msra.mxu0 0.0
        %592 = vmatprep.subr.mxu0 0.0
        %593 = vmatpush1.msra.mxu0 0.0
        %594 = vmatprep.subr.mxu0 0.0
        %595 = vmatpush1.msra.mxu0 0.0
        %596 = vmatprep.subr.mxu0 0.0
        %597 = vmatpush1.msra.mxu0 0.0
        %598 = vmatprep.subr.mxu0 0.0
        %599 = vmatpush1.msra.mxu0 0.0
        %600 = vmatprep.subr.mxu0 0.0
        %601 = vmatpush1.msra.mxu0 0.0
        %602 = vmatprep.subr.mxu0 0.0
        %603 = vmatpush1.msra.mxu0 0.0
        %604 = vmatprep.subr.mxu0 0.0
        %605 = vmatpush1.msra.mxu0 0.0
        %606 = vmatprep.subr.mxu0 0.0
        %607 = vmatpush1.msra.mxu0 0.0
        %608 = vmatprep.subr.mxu0 0.0
        %609 = vmatpush1.msra.mxu0 0.0
        %610 = vmatprep.subr.mxu0 0.0
        %611 = vmatpush1.msra.mxu0 0.0
        %612 = vmatprep.subr.mxu0 0.0
        %613 = vmatpush1.msra.mxu0 0.0
        %614 = vmatprep.subr.mxu0 0.0
        %615 = vmatpush1.msra.mxu0 0.0
        %616 = vmatprep.subr.mxu0 0.0
        %617 = vmatpush1.msra.mxu0 0.0
        %618 = vmatprep.subr.mxu0 0.0
        %619 = vmatpush1.msra.mxu0 0.0
        %620 = vmatprep.subr.mxu0 0.0
        %621 = vmatpush1.msra.mxu0 0.0
        %622 = vmatprep.subr.mxu0 0.0
        %623 = vmatpush1.msra.mxu0 0.0
        %624 = vmatprep.subr.mxu0 0.0
        %625 = vmatpush1.msra.mxu0 0.0
        %626 = vmatprep.subr.mxu0 0.0
        %627 = vmatpush1.msra.mxu0 0.0
        %628 = vmatprep.subr.mxu0 0.0
        %629 = vmatpush1.msra.mxu0 0.0
        %630 = vmatprep.subr.mxu0 0.0
        %631 = vmatpush1.msra.mxu0 0.0
        %632 = vmatprep.subr.mxu0 0.0
        %633 = vmatpush1.msra.mxu0 0.0
        %634 = vmatprep.subr.mxu0 0.0
        %635 = vmatpush1.msra.mxu0 0.0
        %636 = vmatprep.mubr.f32.mxu0 0.0
        %637 = vmatmul.mubr.f32.gmra.mrb[0].mxu0 %v570
        %v638 = vpop.f32.mrb[0].mxu0
        %v639 = vadd.f32 0.0, %v638
        %v640 = vpop.f32.mrb[0].mxu0
        %641 = vdwg.mxu0
        %642 = vset.pattern.permute.xlu0 1
        %643 = vperm.xlu0 %642, %v501
        %v644 = vpop.permute.xlu0 %643
        %v646 = vlaneseq
        %v647 = vshrl.u32 %v646, 7
        %v648 = vsub.s32 1, %v647
        %v649 = vrot.slane %v520, %v648
        %v650 = vadd.f32 %v644, %v649
        %vm651 = vcmp.gt.f32.partialorder %v650, 0.0
        %v652 = vmul.f32 %v650, 0.2
        %v653 = vsel %vm651, %v650, %v652
        %v654 = vsel %vm537, %v653, -1e+30
        %v655 = vsel %vm554, %v654, -inf
        %656 = vmax.xlane.f32.xlu0 %v655
        %v657 = vpop.xlane.xlu0 %656
        %v658 = vsub.f32 %v654, %v657
        %v659 = vmul.f32 %v658, 1.442695
        %v660 = vpow.pop %v659
        %v661 = vmul.f32 %v660, %v539
        %v662 = vsel %vm554, %v661, 0.0
        %663 = vadd.xlane.f32.xlu0 %v662
        %v664 = vpop.xlane.xlu0 %663
        %v665 = vmax.f32 %v664, 1e-20
        %v666 = vrcp.pop %v665
        %v667 = vmul.f32 %v661, %v666
        %s668 = scalar_lea.vmem %s268, 8 [#allocation6]
        %669 = vst.msk [vmem:[%s668] sm:$0xff] %vm554, %v667
        %670 = vrot.lane.b32.xlu0 %v425, 120
        %v671 = vpop.permute.xlu0 %670
        %v674 = vsel %vm554, %v667, 0
        %676 = vmatprep.subr.mxu0 0.0
        %677 = vmatpush1.msra.mxu0 %v671
        %678 = vmatprep.subr.mxu0 0.0
        %679 = vmatpush1.msra.mxu0 0.0
        %680 = vmatprep.subr.mxu0 0.0
        %681 = vmatpush1.msra.mxu0 0.0
        %682 = vmatprep.subr.mxu0 0.0
        %683 = vmatpush1.msra.mxu0 0.0
        %684 = vmatprep.subr.mxu0 0.0
        %685 = vmatpush1.msra.mxu0 0.0
        %686 = vmatprep.subr.mxu0 0.0
        %687 = vmatpush1.msra.mxu0 0.0
        %688 = vmatprep.subr.mxu0 0.0
        %689 = vmatpush1.msra.mxu0 0.0
        %690 = vmatprep.subr.mxu0 0.0
        %691 = vmatpush1.msra.mxu0 0.0
        %692 = vmatprep.subr.mxu0 0.0
        %693 = vmatpush1.msra.mxu0 0.0
        %694 = vmatprep.subr.mxu0 0.0
        %695 = vmatpush1.msra.mxu0 0.0
        %696 = vmatprep.subr.mxu0 0.0
        %697 = vmatpush1.msra.mxu0 0.0
        %698 = vmatprep.subr.mxu0 0.0
        %699 = vmatpush1.msra.mxu0 0.0
        %700 = vmatprep.subr.mxu0 0.0
        %701 = vmatpush1.msra.mxu0 0.0
        %702 = vmatprep.subr.mxu0 0.0
        %703 = vmatpush1.msra.mxu0 0.0
        %704 = vmatprep.subr.mxu0 0.0
        %705 = vmatpush1.msra.mxu0 0.0
        %706 = vmatprep.subr.mxu0 0.0
        %707 = vmatpush1.msra.mxu0 0.0
        %708 = vmatprep.subr.mxu0 0.0
        %709 = vmatpush1.msra.mxu0 0.0
        %710 = vmatprep.subr.mxu0 0.0
        %711 = vmatpush1.msra.mxu0 0.0
        %712 = vmatprep.subr.mxu0 0.0
        %713 = vmatpush1.msra.mxu0 0.0
        %714 = vmatprep.subr.mxu0 0.0
        %715 = vmatpush1.msra.mxu0 0.0
        %716 = vmatprep.subr.mxu0 0.0
        %717 = vmatpush1.msra.mxu0 0.0
        %718 = vmatprep.subr.mxu0 0.0
        %719 = vmatpush1.msra.mxu0 0.0
        %720 = vmatprep.subr.mxu0 0.0
        %721 = vmatpush1.msra.mxu0 0.0
        %722 = vmatprep.subr.mxu0 0.0
        %723 = vmatpush1.msra.mxu0 0.0
        %724 = vmatprep.subr.mxu0 0.0
        %725 = vmatpush1.msra.mxu0 0.0
        %726 = vmatprep.subr.mxu0 0.0
        %727 = vmatpush1.msra.mxu0 0.0
        %728 = vmatprep.subr.mxu0 0.0
        %729 = vmatpush1.msra.mxu0 0.0
        %730 = vmatprep.subr.mxu0 0.0
        %731 = vmatpush1.msra.mxu0 0.0
        %732 = vmatprep.subr.mxu0 0.0
        %733 = vmatpush1.msra.mxu0 0.0
        %734 = vmatprep.subr.mxu0 0.0
        %735 = vmatpush1.msra.mxu0 0.0
        %736 = vmatprep.subr.mxu0 0.0
        %737 = vmatpush1.msra.mxu0 0.0
        %738 = vmatprep.subr.mxu0 0.0
        %739 = vmatpush1.msra.mxu0 0.0
        %740 = vmatprep.mubr.f32.mxu0 0.0
        %741 = vmatmul.mubr.f32.gmra.mrb[0].mxu0 %v674
        %v742 = vpop.f32.mrb[0].mxu0
        %v743 = vadd.f32 0.0, %v742
        %v744 = vpop.f32.mrb[0].mxu0
        %745 = vdwg.mxu0
        %746 = vset.pattern.permute.xlu0 2
        %747 = vperm.xlu0 %746, %v501
        %v748 = vpop.permute.xlu0 %747
        %v750 = vlaneseq
        %v751 = vshrl.u32 %v750, 7
        %v752 = vsub.s32 2, %v751
        %v753 = vrot.slane %v520, %v752
        %v754 = vadd.f32 %v748, %v753
        %vm755 = vcmp.gt.f32.partialorder %v754, 0.0
        %v756 = vmul.f32 %v754, 0.2
        %v757 = vsel %vm755, %v754, %v756
        %v758 = vsel %vm537, %v757, -1e+30
        %v759 = vsel %vm554, %v758, -inf
        %760 = vmax.xlane.f32.xlu0 %v759
        %v761 = vpop.xlane.xlu0 %760
        %v762 = vsub.f32 %v758, %v761
        %v763 = vmul.f32 %v762, 1.442695
        %v764 = vpow.pop %v763
        %v765 = vmul.f32 %v764, %v539
        %v766 = vsel %vm554, %v765, 0.0
        %767 = vadd.xlane.f32.xlu0 %v766
        %v768 = vpop.xlane.xlu0 %767
        %v769 = vmax.f32 %v768, 1e-20
        %v770 = vrcp.pop %v769
        %v771 = vmul.f32 %v765, %v770
        %s772 = scalar_lea.vmem %s268, 16 [#allocation6]
        %773 = vst.msk [vmem:[%s772] sm:$0xff] %vm554, %v771
        %774 = vrot.lane.b32.xlu0 %v425, 112
        %v775 = vpop.permute.xlu0 %774
        %v778 = vsel %vm554, %v771, 0
        %780 = vmatprep.subr.mxu0 0.0
        %781 = vmatpush1.msra.mxu0 %v775
        %782 = vmatprep.subr.mxu0 0.0
        %783 = vmatpush1.msra.mxu0 0.0
        %784 = vmatprep.subr.mxu0 0.0
        %785 = vmatpush1.msra.mxu0 0.0
        %786 = vmatprep.subr.mxu0 0.0
        %787 = vmatpush1.msra.mxu0 0.0
        %788 = vmatprep.subr.mxu0 0.0
        %789 = vmatpush1.msra.mxu0 0.0
        %790 = vmatprep.subr.mxu0 0.0
        %791 = vmatpush1.msra.mxu0 0.0
        %792 = vmatprep.subr.mxu0 0.0
        %793 = vmatpush1.msra.mxu0 0.0
        %794 = vmatprep.subr.mxu0 0.0
        %795 = vmatpush1.msra.mxu0 0.0
        %796 = vmatprep.subr.mxu0 0.0
        %797 = vmatpush1.msra.mxu0 0.0
        %798 = vmatprep.subr.mxu0 0.0
        %799 = vmatpush1.msra.mxu0 0.0
        %800 = vmatprep.subr.mxu0 0.0
        %801 = vmatpush1.msra.mxu0 0.0
        %802 = vmatprep.subr.mxu0 0.0
        %803 = vmatpush1.msra.mxu0 0.0
        %804 = vmatprep.subr.mxu0 0.0
        %805 = vmatpush1.msra.mxu0 0.0
        %806 = vmatprep.subr.mxu0 0.0
        %807 = vmatpush1.msra.mxu0 0.0
        %808 = vmatprep.subr.mxu0 0.0
        %809 = vmatpush1.msra.mxu0 0.0
        %810 = vmatprep.subr.mxu0 0.0
        %811 = vmatpush1.msra.mxu0 0.0
        %812 = vmatprep.subr.mxu0 0.0
        %813 = vmatpush1.msra.mxu0 0.0
        %814 = vmatprep.subr.mxu0 0.0
        %815 = vmatpush1.msra.mxu0 0.0
        %816 = vmatprep.subr.mxu0 0.0
        %817 = vmatpush1.msra.mxu0 0.0
        %818 = vmatprep.subr.mxu0 0.0
        %819 = vmatpush1.msra.mxu0 0.0
        %820 = vmatprep.subr.mxu0 0.0
        %821 = vmatpush1.msra.mxu0 0.0
        %822 = vmatprep.subr.mxu0 0.0
        %823 = vmatpush1.msra.mxu0 0.0
        %824 = vmatprep.subr.mxu0 0.0
        %825 = vmatpush1.msra.mxu0 0.0
        %826 = vmatprep.subr.mxu0 0.0
        %827 = vmatpush1.msra.mxu0 0.0
        %828 = vmatprep.subr.mxu0 0.0
        %829 = vmatpush1.msra.mxu0 0.0
        %830 = vmatprep.subr.mxu0 0.0
        %831 = vmatpush1.msra.mxu0 0.0
        %832 = vmatprep.subr.mxu0 0.0
        %833 = vmatpush1.msra.mxu0 0.0
        %834 = vmatprep.subr.mxu0 0.0
        %835 = vmatpush1.msra.mxu0 0.0
        %836 = vmatprep.subr.mxu0 0.0
        %837 = vmatpush1.msra.mxu0 0.0
        %838 = vmatprep.subr.mxu0 0.0
        %839 = vmatpush1.msra.mxu0 0.0
        %840 = vmatprep.subr.mxu0 0.0
        %841 = vmatpush1.msra.mxu0 0.0
        %842 = vmatprep.subr.mxu0 0.0
        %843 = vmatpush1.msra.mxu0 0.0
        %844 = vmatprep.mubr.f32.mxu0 0.0
        %845 = vmatmul.mubr.f32.gmra.mrb[0].mxu0 %v778
        %v846 = vpop.f32.mrb[0].mxu0
        %v847 = vadd.f32 0.0, %v846
        %v848 = vpop.f32.mrb[0].mxu0
        %849 = vdwg.mxu0
        %850 = vset.pattern.permute.xlu0 3
        %851 = vperm.xlu0 %850, %v501
        %v852 = vpop.permute.xlu0 %851
        %v854 = vlaneseq
        %v855 = vshrl.u32 %v854, 7
        %v856 = vsub.s32 3, %v855
        %v857 = vrot.slane %v520, %v856
        %v858 = vadd.f32 %v852, %v857
        %vm859 = vcmp.gt.f32.partialorder %v858, 0.0
        %v860 = vmul.f32 %v858, 0.2
        %v861 = vsel %vm859, %v858, %v860
        %v862 = vsel %vm537, %v861, -1e+30
        %v863 = vsel %vm554, %v862, -inf
        %864 = vmax.xlane.f32.xlu0 %v863
        %v865 = vpop.xlane.xlu0 %864
        %v866 = vsub.f32 %v862, %v865
        %v867 = vmul.f32 %v866, 1.442695
        %v868 = vpow.pop %v867
        %v869 = vmul.f32 %v868, %v539
        %v870 = vsel %vm554, %v869, 0.0
        %871 = vadd.xlane.f32.xlu0 %v870
        %v872 = vpop.xlane.xlu0 %871
        %v873 = vmax.f32 %v872, 1e-20
        %v874 = vrcp.pop %v873
        %v875 = vmul.f32 %v869, %v874
        %s876 = scalar_lea.vmem %s268, 24 [#allocation6]
        %877 = vst.msk [vmem:[%s876] sm:$0xff] %vm554, %v875
        %878 = vrot.lane.b32.xlu0 %v425, 104
        %v879 = vpop.permute.xlu0 %878
        %v882 = vsel %vm554, %v875, 0
        %884 = vmatprep.subr.mxu0 0.0
        %885 = vmatpush1.msra.mxu0 %v879
        %886 = vmatprep.subr.mxu0 0.0
        %887 = vmatpush1.msra.mxu0 0.0
        %888 = vmatprep.subr.mxu0 0.0
        %889 = vmatpush1.msra.mxu0 0.0
        %890 = vmatprep.subr.mxu0 0.0
        %891 = vmatpush1.msra.mxu0 0.0
        %892 = vmatprep.subr.mxu0 0.0
        %893 = vmatpush1.msra.mxu0 0.0
        %894 = vmatprep.subr.mxu0 0.0
        %895 = vmatpush1.msra.mxu0 0.0
        %896 = vmatprep.subr.mxu0 0.0
        %897 = vmatpush1.msra.mxu0 0.0
        %898 = vmatprep.subr.mxu0 0.0
        %899 = vmatpush1.msra.mxu0 0.0
        %900 = vmatprep.subr.mxu0 0.0
        %901 = vmatpush1.msra.mxu0 0.0
        %902 = vmatprep.subr.mxu0 0.0
        %903 = vmatpush1.msra.mxu0 0.0
        %904 = vmatprep.subr.mxu0 0.0
        %905 = vmatpush1.msra.mxu0 0.0
        %906 = vmatprep.subr.mxu0 0.0
        %907 = vmatpush1.msra.mxu0 0.0
        %908 = vmatprep.subr.mxu0 0.0
        %909 = vmatpush1.msra.mxu0 0.0
        %910 = vmatprep.subr.mxu0 0.0
        %911 = vmatpush1.msra.mxu0 0.0
        %912 = vmatprep.subr.mxu0 0.0
        %913 = vmatpush1.msra.mxu0 0.0
        %914 = vmatprep.subr.mxu0 0.0
        %915 = vmatpush1.msra.mxu0 0.0
        %916 = vmatprep.subr.mxu0 0.0
        %917 = vmatpush1.msra.mxu0 0.0
        %918 = vmatprep.subr.mxu0 0.0
        %919 = vmatpush1.msra.mxu0 0.0
        %920 = vmatprep.subr.mxu0 0.0
        %921 = vmatpush1.msra.mxu0 0.0
        %922 = vmatprep.subr.mxu0 0.0
        %923 = vmatpush1.msra.mxu0 0.0
        %924 = vmatprep.subr.mxu0 0.0
        %925 = vmatpush1.msra.mxu0 0.0
        %926 = vmatprep.subr.mxu0 0.0
        %927 = vmatpush1.msra.mxu0 0.0
        %928 = vmatprep.subr.mxu0 0.0
        %929 = vmatpush1.msra.mxu0 0.0
        %930 = vmatprep.subr.mxu0 0.0
        %931 = vmatpush1.msra.mxu0 0.0
        %932 = vmatprep.subr.mxu0 0.0
        %933 = vmatpush1.msra.mxu0 0.0
        %934 = vmatprep.subr.mxu0 0.0
        %935 = vmatpush1.msra.mxu0 0.0
        %936 = vmatprep.subr.mxu0 0.0
        %937 = vmatpush1.msra.mxu0 0.0
        %938 = vmatprep.subr.mxu0 0.0
        %939 = vmatpush1.msra.mxu0 0.0
        %940 = vmatprep.subr.mxu0 0.0
        %941 = vmatpush1.msra.mxu0 0.0
        %942 = vmatprep.subr.mxu0 0.0
        %943 = vmatpush1.msra.mxu0 0.0
        %944 = vmatprep.subr.mxu0 0.0
        %945 = vmatpush1.msra.mxu0 0.0
        %946 = vmatprep.subr.mxu0 0.0
        %947 = vmatpush1.msra.mxu0 0.0
        %948 = vmatprep.mubr.f32.mxu0 0.0
        %949 = vmatmul.mubr.f32.gmra.mrb[0].mxu0 %v882
        %v950 = vpop.f32.mrb[0].mxu0
        %v951 = vadd.f32 0.0, %v950
        %v952 = vpop.f32.mrb[0].mxu0
        %953 = vdwg.mxu0
        %955 = vrot.lane.b32.xlu0 %v743, 8
        %v956 = vpop.permute.xlu0 %955
        %959 = vrot.lane.b32.xlu0 %v847, 16
        %v960 = vpop.permute.xlu0 %959
        %963 = vrot.lane.b32.xlu0 %v951, 24
        %v964 = vpop.permute.xlu0 %963
        %v966 = vsel %vm554, %v639, %v956
        %v967 = vsel %vm276, %v966, %v960
        %vm968 = vcmask 195584
        %v969 = vsel %vm968, %v967, %v964
        %970 = vst.msk [vmem:[%s261] sm:$0xff] %vm430, %v969
        %s971 = sand.u32 %s143, 1
        %s972 = scalar_lea.sflag [#allocation4], %s971
        %s973 = sand.u32 %s143, 1
        %s974 = smul.addr %s973, 8
        %s975 = scalar_lea.vmem [#allocation5], %s974
        %s976 = sand.u32 %s169, 1
        %s977 = scalar_lea.sflag [#allocation7], %s976
        %s978 = sand.u32 %s169, 1
        %s979 = smul.addr %s978, 32
        %s980 = scalar_lea.vmem [#allocation6], %s979
        // Predicated region
        $region45: #{tpu_custom_call.1} parent=39 // pred_check
          %p981 = pneg %p153
        $region46: #{tpu_custom_call.1} parent=39 // pred_check_branch
          %983 = sbr.rel (%p981) target = $region48
        $region47: #{tpu_custom_call.1} parent=39 // pred_region
          %s985 = ssub.s32 128, 128
          %986 = vsyncadd %s972, %s985
          %s987 = smul.addr %s25, 128
          %s988 = scalar_lea.hbm %s5, %s987
          %s990 = sshll.u32 %s975, 4
          %s991 = int_to_ptr.vmem [resolvable:$true] %s990
          %993 = dma.vmem_to_hbm [thread:$0]  %s991, 128, %s988, %s972
        $region48: #{tpu_custom_call.1} parent=39 // pred_fallthru
          _
        // Predicated region
        $region49: #{tpu_custom_call.1} parent=39 // pred_check
          %p994 = pneg %p179
        $region50: #{tpu_custom_call.1} parent=39 // pred_check_branch
          %996 = sbr.rel (%p994) target = $region52
        $region51: #{tpu_custom_call.1} parent=39 // pred_region
          %s998 = ssub.s32 512, 512
          %999 = vsyncadd %s977, %s998
          %s1000 = smul.addr %s25, 4
          %s1001 = smul.addr %s1000, 128
          %s1002 = scalar_lea.hbm %s6, %s1001
          %s1003 = sshll.u32 %s980, 4
          %s1004 = int_to_ptr.vmem [resolvable:$true] %s1003
          %1009 = dma.vmem_to_hbm [thread:$0]  %s1004, 512, %s1002, %s977, 128, 128, 8
        $region52: #{tpu_custom_call.1} parent=39 // pred_fallthru
          _
      $region40: #{tpu_custom_call.1} parent=5 // pred_fallthru
        _
      %p1010 = scmp.le.s32.totalorder 2, %s20
      // Predicated region
      $region53: #{tpu_custom_call.1} parent=5 // pred_check
        %p1011 = pneg %p1010
      $region54: #{tpu_custom_call.1} parent=5 // pred_check_branch
        %1013 = sbr.rel (%p1011) target = $region56
      $region55: #{tpu_custom_call.1} parent=5 // pred_region
        %s1014 = ssub.s32 %s20, 2
        // Predicated region
        $region57: #{tpu_custom_call.1} parent=55 // pred_check
          %p1015 = pneg %p159
        $region58: #{tpu_custom_call.1} parent=55 // pred_check_branch
          %1017 = sbr.rel (%p1015) target = $region60
        $region59: #{tpu_custom_call.1} parent=55 // pred_region
          %s1018 = sand.u32 %s144, 1
          %s1019 = scalar_lea.sflag [#allocation4], %s1018
          %s1020 = sand.u32 %s144, 1
          %s1021 = smul.addr %s1020, 8
          %s1022 = scalar_lea.vmem [#allocation5], %s1021
          %1023 = dma.done %s1019, 128
        $region60: #{tpu_custom_call.1} parent=55 // pred_fallthru
          _
        // Predicated region
        $region61: #{tpu_custom_call.1} parent=55 // pred_check
          %p1024 = pneg %p185
        $region62: #{tpu_custom_call.1} parent=55 // pred_check_branch
          %1026 = sbr.rel (%p1024) target = $region64
        $region63: #{tpu_custom_call.1} parent=55 // pred_region
          %s1027 = sand.u32 %s170, 1
          %s1028 = scalar_lea.sflag [#allocation7], %s1027
          %s1029 = sand.u32 %s170, 1
          %s1030 = smul.addr %s1029, 32
          %s1031 = scalar_lea.vmem [#allocation6], %s1030
          %1032 = dma.done %s1028, 512
        $region64: #{tpu_custom_call.1} parent=55 // pred_fallthru
          _
      $region56: #{tpu_custom_call.1} parent=5 // pred_fallthru
        _
    $region6: #{tpu_custom_call.1} parent=1 // loop_footer
      %s24 = sadd.s32 1, %s20
    $region7: #{tpu_custom_call.1} parent=1 // loop_footer_branch
      %19 = sbr.rel target = $region3
    $region8: #{tpu_custom_call.1} parent=1 // loop_exit
      _
    %1033 = vsyncpa [#allocation3], 1
    %s1034 = scalar_lea.sflag [#allocation3], 1
    %1035 = vsyncpa %s1034, 1
    %1036 = vsyncpa [#allocation4], 1
    %s1037 = scalar_lea.sflag [#allocation4], 1
    %1038 = vsyncpa %s1037, 1
    %1039 = vsyncpa [#allocation7], 1
    %s1040 = scalar_lea.sflag [#allocation7], 1
    %1041 = vsyncpa %s1040, 1

</llo_original>
